<compile_context>
chip_gen: v6e
topology: v6e:2x2x1
jax: 0.10.0
libtpu: 0.0.40
codegen_flags: <defaults>
</compile_context>

<pallas_src>
from functools import partial

import jax
import jax.numpy as jnp
from jax.experimental import pallas as pl
from jax.experimental.pallas import tpu as pltpu

NEG_INF = -1e30  # finite "masked key" bias (avoids NaN on fully-masked tiles)


# --------------------------------------------------------------------------
# Pallas flash-attention kernel (online softmax over kv tiles)
# --------------------------------------------------------------------------
def _flash_attn_kernel(q_ref, k_ref, v_ref, bias_ref, o_ref,
                       m_sc, l_sc, acc_sc, *, sm_scale):
    # q_ref:    (1, 1, tq, dh)   current (batch, head, q-tile)
    # k_ref:    (1, 1, tk, dh)   current (batch, head, kv-tile)
    # v_ref:    (1, 1, tk, dh)
    # bias_ref: (1, 1, tk)       additive key-mask bias (0 keep / NEG_INF drop)
    # o_ref:    (1, 1, tq, dh)
    # scratch:  m_sc, l_sc (tq, 1) f32;  acc_sc (tq, dh) f32
    ki = pl.program_id(3)

    @pl.when(ki == 0)
    def _():
        m_sc[...] = jnp.full_like(m_sc, -jnp.inf)
        l_sc[...] = jnp.zeros_like(l_sc)
        acc_sc[...] = jnp.zeros_like(acc_sc)

    q = q_ref[0, 0].astype(jnp.float32)          # (tq, dh)
    k = k_ref[0, 0].astype(jnp.float32)          # (tk, dh)
    v = v_ref[0, 0].astype(jnp.float32)          # (tk, dh)
    bias = bias_ref[0]                           # (1, tk) f32

    # scores (tq, tk) = q @ k^T : contract the feature dim, no transpose copy.
    s = jax.lax.dot_general(q, k, (((1,), (1,)), ((), ())),
                            preferred_element_type=jnp.float32)
    s = s * sm_scale + bias

    m_prev = m_sc[...]                                           # (tq, 1)
    m_new = jnp.maximum(m_prev, jnp.max(s, axis=-1, keepdims=True))
    alpha = jnp.exp(m_prev - m_new)
    p = jnp.exp(s - m_new)                                       # (tq, tk)
    l_sc[...] = alpha * l_sc[...] + jnp.sum(p, axis=-1, keepdims=True)
    acc_sc[...] = alpha * acc_sc[...] + jnp.dot(
        p, v, preferred_element_type=jnp.float32)
    m_sc[...] = m_new

    @pl.when(ki == pl.num_programs(3) - 1)
    def _():
        o_ref[0, 0] = (acc_sc[...] / l_sc[...]).astype(o_ref.dtype)


def _pick_tile(n, target=128):
    """Largest tile <= target that divides n (full n when n <= target)."""
    if n <= target:
        return n
    for t in (target, 64, 32, 16, 8):
        if n % t == 0:
            return t
    return n


def flash_attention(q, k, v, bias, *, sm_scale):
    """q, k, v: (B, H, N, dh); bias: (B, 1, N) f32 additive key-mask bias."""
    B, H, N, dh = q.shape
    tq = _pick_tile(N)
    tk = _pick_tile(N)
    grid = (B, H, N // tq, N // tk)

    return pl.pallas_call(
        partial(_flash_attn_kernel, sm_scale=sm_scale),
        out_shape=jax.ShapeDtypeStruct((B, H, N, dh), q.dtype),
        grid_spec=pltpu.PrefetchScalarGridSpec(
            num_scalar_prefetch=0,
            grid=grid,
            in_specs=[
                pl.BlockSpec((1, 1, tq, dh), lambda b, h, qi, ki: (b, h, qi, 0)),
                pl.BlockSpec((1, 1, tk, dh), lambda b, h, qi, ki: (b, h, ki, 0)),
                pl.BlockSpec((1, 1, tk, dh), lambda b, h, qi, ki: (b, h, ki, 0)),
                pl.BlockSpec((1, 1, tk), lambda b, h, qi, ki: (b, 0, ki)),
            ],
            out_specs=pl.BlockSpec((1, 1, tq, dh),
                                   lambda b, h, qi, ki: (b, h, qi, 0)),
            scratch_shapes=[
                pltpu.VMEM((tq, 1), jnp.float32),   # running max m
                pltpu.VMEM((tq, 1), jnp.float32),   # running denom l
                pltpu.VMEM((tq, dh), jnp.float32),  # running output acc
            ],
        ),
        compiler_params=pltpu.CompilerParams(
            dimension_semantics=("parallel", "parallel", "parallel",
                                 "arbitrary")),
    )(q, k, v, bias)


# --------------------------------------------------------------------------
# RoPE helpers (cheap elementwise -> kept in XLA, outside the kernel)
# --------------------------------------------------------------------------
def rotate_half(x):
    x1 = x[..., 0::2]
    x2 = x[..., 1::2]
    return jnp.stack((-x2, x1), axis=-1).reshape(x.shape)


def apply_rotary_pos_emb(t, freqs, scale=1.0):
    rot_dim = freqs.shape[-1]
    seq_len = t.shape[-2]
    freqs = freqs[:, -seq_len:, :]
    t_rot, t_unrot = t[..., :rot_dim], t[..., rot_dim:]
    t_rot = (t_rot * jnp.cos(freqs) * scale
             + rotate_half(t_rot) * jnp.sin(freqs) * scale)
    return jnp.concatenate([t_rot, t_unrot], axis=-1).astype(t.dtype)


# --------------------------------------------------------------------------
# Full Attention.forward equivalent (inference; dropout is a no-op)
# --------------------------------------------------------------------------
def attention_forward(x, params, mask=None, rope=None, *, heads, dim_head):
    """x: (B, N, dim); params in torch layout:
       (wq (inner,dim), bq, wk, bk, wv, bv, wo (dim,inner))."""
    wq, bq, wk, bk, wv, bv, wo = params
    B, N, _ = x.shape
    inner = heads * dim_head
    hp = jax.lax.Precision.HIGHEST

    # Projections as batched XLA matmuls (real MXU utilization; weights never
    # enter VMEM). Torch (out, in) layout consumed directly via einsum.
    q = jnp.einsum('bnd,od->bno', x, wq, precision=hp) + bq
    k = jnp.einsum('bnd,od->bno', x, wk, precision=hp) + bk
    v = jnp.einsum('bnd,od->bno', x, wv, precision=hp) + bv

    if rope is not None:
        freqs, xpos_scale = rope
        q_scale, k_scale = ((xpos_scale, xpos_scale ** -1.0)
                            if xpos_scale is not None else (1.0, 1.0))
        q = apply_rotary_pos_emb(q, freqs, q_scale)
        k = apply_rotary_pos_emb(k, freqs, k_scale)

    def split_heads(t):
        return t.reshape(B, N, heads, dim_head).transpose(0, 2, 1, 3)

    qh, kh, vh = split_heads(q), split_heads(k), split_heads(v)

    # Key mask -> additive bias (0 keep, NEG_INF drop).
    if mask is not None:
        bias = jnp.where(mask, 0.0, NEG_INF).astype(jnp.float32)[:, None, :]
    else:
        bias = jnp.zeros((B, 1, N), dtype=jnp.float32)

    o = flash_attention(qh, kh, vh, bias, sm_scale=1.0 / (dim_head ** 0.5))

    o = o.transpose(0, 2, 1, 3).reshape(B, N, inner)
    out = jnp.einsum('bni,di->bnd', o, wo, precision=hp)  # to_out (no bias)
    # nn.Dropout: inference no-op.
    if mask is not None:
        out = out * mask[..., None].astype(out.dtype)
    return out


# --------------------------------------------------------------------------
# Pure-JAX reference (mirrors F.scaled_dot_product_attention semantics)
# --------------------------------------------------------------------------
def _reference_attention(x, params, mask, *, heads, dim_head):
    wq, bq, wk, bk, wv, bv, wo = params
    B, N, _ = x.shape
    hp = jax.lax.Precision.HIGHEST
    q = jnp.einsum('bnd,od->bno', x, wq, precision=hp) + bq
    k = jnp.einsum('bnd,od->bno', x, wk, precision=hp) + bk
    v = jnp.einsum('bnd,od->bno', x, wv, precision=hp) + bv

    def split_heads(t):
        return t.reshape(B, N, heads, dim_head).transpose(0, 2, 1, 3)

    q, k, v = split_heads(q), split_heads(k), split_heads(v)
    s = jnp.einsum('bhqd,bhkd->bhqk', q, k, precision=hp) / (dim_head ** 0.5)
    if mask is not None:
        s = s + jnp.where(mask, 0.0, NEG_INF)[:, None, None, :]
    p = jax.nn.softmax(s, axis=-1)
    o = jnp.einsum('bhqk,bhkd->bhqd', p, v, precision=hp)
    o = o.transpose(0, 2, 1, 3).reshape(B, N, heads * dim_head)
    out = jnp.einsum('bni,di->bnd', o, wo, precision=hp)
    if mask is not None:
        out = out * mask[..., None].astype(out.dtype)
    return out


if __name__ == "__main__":
    B, N, dim = 2, 8, 32
    heads, dim_head = 2, 16
    inner = heads * dim_head

    key = jax.random.PRNGKey(0)
    ks = jax.random.split(key, 8)
    x = jax.random.normal(ks[0], (B, N, dim), dtype=jnp.float32)
    wq = jax.random.normal(ks[1], (inner, dim), jnp.float32) / jnp.sqrt(dim)
    bq = jax.random.normal(ks[2], (inner,), jnp.float32) * 0.1
    wk = jax.random.normal(ks[3], (inner, dim), jnp.float32) / jnp.sqrt(dim)
    bk = jax.random.normal(ks[4], (inner,), jnp.float32) * 0.1
    wv = jax.random.normal(ks[5], (inner, dim), jnp.float32) / jnp.sqrt(dim)
    bv = jax.random.normal(ks[6], (inner,), jnp.float32) * 0.1
    wo = jax.random.normal(ks[7], (dim, inner), jnp.float32) / jnp.sqrt(inner)
    params = (wq, bq, wk, bk, wv, bv, wo)

    mask = jnp.array([[True] * N,
                      [True] * (N - 3) + [False] * 3])

    # With key mask.
    out = attention_forward(x, params, mask=mask, rope=None,
                            heads=heads, dim_head=dim_head)
    jax.block_until_ready(out)
    ref = _reference_attention(x, params, mask, heads=heads, dim_head=dim_head)
    assert jnp.allclose(out, ref, atol=1e-4, rtol=1e-4), (
        f"masked mismatch: max abs err {jnp.max(jnp.abs(out - ref))}")

    # Without mask.
    out2 = attention_forward(x, params, mask=None, rope=None,
                             heads=heads, dim_head=dim_head)
    jax.block_until_ready(out2)
    ref2 = _reference_attention(x, params, None, heads=heads, dim_head=dim_head)
    assert jnp.allclose(out2, ref2, atol=1e-4, rtol=1e-4), (
        f"unmasked mismatch: max abs err {jnp.max(jnp.abs(out2 - ref2))}")

    print("KERNEL_OK")
</pallas_src>

<mosaic_0001>
module attributes {stable_mosaic.version = 11 : i64} {
  func.func @_flash_attn_kernel(%arg0: i32, %arg1: i32, %arg2: i32, %arg3: i32, %arg4: memref<1x1x8x16xf32, #tpu.memory_space<vmem>>, %arg5: memref<1x1x8x16xf32, #tpu.memory_space<vmem>>, %arg6: memref<1x1x8x16xf32, #tpu.memory_space<vmem>>, %arg7: memref<1x1x8xf32, #tpu.memory_space<vmem>>, %arg8: memref<1x1x8x16xf32, #tpu.memory_space<vmem>>, %arg9: memref<8x1xf32, #tpu.memory_space<vmem>>, %arg10: memref<8x1xf32, #tpu.memory_space<vmem>>, %arg11: memref<8x16xf32, #tpu.memory_space<vmem>>) attributes {dimension_semantics = [#tpu.dimension_semantics<parallel>, #tpu.dimension_semantics<parallel>, #tpu.dimension_semantics<parallel>, #tpu.dimension_semantics<arbitrary>], iteration_bounds = array<i64: 2, 2, 1, 1>, scalar_prefetch = 0 : i64, scratch_operands = 3 : i64, tpu.core_type = #tpu.core_type<tc>, window_params = [{transform_indices = @transform_0, window_bounds = array<i64: 1, 1, 8, 16>}, {transform_indices = @transform_1, window_bounds = array<i64: 1, 1, 8, 16>}, {transform_indices = @transform_2, window_bounds = array<i64: 1, 1, 8, 16>}, {transform_indices = @transform_3, window_bounds = array<i64: 1, 1, 8>}, {transform_indices = @transform_4, window_bounds = array<i64: 1, 1, 8, 16>}]} {
    %c0_i32 = arith.constant 0 : i32
    %0 = arith.cmpi eq, %arg3, %c0_i32 : i32
    %1 = arith.extui %0 : i1 to i32
    %c0_i32_0 = arith.constant 0 : i32
    %2 = arith.cmpi ne, %1, %c0_i32_0 : i32
    scf.if %2 {
      %cst_33 = arith.constant 0xFF800000 : f32
      %41 = vector.broadcast %cst_33 : f32 to vector<8x1xf32>
      %c0_34 = arith.constant 0 : index
      %c0_35 = arith.constant 0 : index
      %42 = vector.load %arg9[%c0_34, %c0_35] : memref<8x1xf32, #tpu.memory_space<vmem>>, vector<8x1xf32>
      tpu.vector_store %arg9[%c0_34, %c0_35], %41 {strides = array<i32>} : memref<8x1xf32, #tpu.memory_space<vmem>>, vector<8x1xf32>,
      %cst_36 = arith.constant 0.000000e+00 : f32
      %43 = vector.broadcast %cst_36 : f32 to vector<8x1xf32>
      %c0_37 = arith.constant 0 : index
      %c0_38 = arith.constant 0 : index
      %44 = vector.load %arg10[%c0_37, %c0_38] : memref<8x1xf32, #tpu.memory_space<vmem>>, vector<8x1xf32>
      tpu.vector_store %arg10[%c0_37, %c0_38], %43 {strides = array<i32>} : memref<8x1xf32, #tpu.memory_space<vmem>>, vector<8x1xf32>,
      %cst_39 = arith.constant 0.000000e+00 : f32
      %45 = vector.broadcast %cst_39 : f32 to vector<8x16xf32>
      %c0_40 = arith.constant 0 : index
      %c0_41 = arith.constant 0 : index
      %46 = vector.load %arg11[%c0_40, %c0_41] : memref<8x16xf32, #tpu.memory_space<vmem>>, vector<8x16xf32>
      tpu.vector_store %arg11[%c0_40, %c0_41], %45 {strides = array<i32>} : memref<8x16xf32, #tpu.memory_space<vmem>>, vector<8x16xf32>,
    } else {
    }
    %c0 = arith.constant 0 : index
    %c0_1 = arith.constant 0 : index
    %c0_2 = arith.constant 0 : index
    %c0_3 = arith.constant 0 : index
    %3 = vector.load %arg4[%c0, %c0_1, %c0_2, %c0_3] : memref<1x1x8x16xf32, #tpu.memory_space<vmem>>, vector<1x1x8x16xf32>
    %4 = vector.shape_cast %3 : vector<1x1x8x16xf32> to vector<8x16xf32>
    %c0_4 = arith.constant 0 : index
    %c0_5 = arith.constant 0 : index
    %c0_6 = arith.constant 0 : index
    %c0_7 = arith.constant 0 : index
    %5 = vector.load %arg5[%c0_4, %c0_5, %c0_6, %c0_7] : memref<1x1x8x16xf32, #tpu.memory_space<vmem>>, vector<1x1x8x16xf32>
    %6 = vector.shape_cast %5 : vector<1x1x8x16xf32> to vector<8x16xf32>
    %c0_8 = arith.constant 0 : index
    %c0_9 = arith.constant 0 : index
    %c0_10 = arith.constant 0 : index
    %c0_11 = arith.constant 0 : index
    %7 = vector.load %arg6[%c0_8, %c0_9, %c0_10, %c0_11] : memref<1x1x8x16xf32, #tpu.memory_space<vmem>>, vector<1x1x8x16xf32>
    %8 = vector.shape_cast %7 : vector<1x1x8x16xf32> to vector<8x16xf32>
    %c0_12 = arith.constant 0 : index
    %c0_13 = arith.constant 0 : index
    %c0_14 = arith.constant 0 : index
    %9 = vector.load %arg7[%c0_12, %c0_13, %c0_14] : memref<1x1x8xf32, #tpu.memory_space<vmem>>, vector<1x1x8xf32>
    %10 = vector.shape_cast %9 : vector<1x1x8xf32> to vector<1x8xf32>
    %cst = arith.constant dense<0.000000e+00> : vector<8x8xf32>
    %11 = tpu.matmul %4, %6, %cst {dimension_numbers = #tpu.dot_dimension_numbers<[1], [1], [0], [0], [0, 0, 1, 0], [], []>} : vector<8x16xf32>, vector<8x16xf32>, vector<8x8xf32> -> vector<8x8xf32>
    %cst_15 = arith.constant 2.500000e-01 : f32
    %12 = vector.broadcast %cst_15 : f32 to vector<8x8xf32>
    %13 = arith.mulf %11, %12 : vector<8x8xf32>
    %14 = vector.broadcast %10 : vector<1x8xf32> to vector<8x8xf32>
    %15 = arith.addf %13, %14 : vector<8x8xf32>
    %c0_16 = arith.constant 0 : index
    %c0_17 = arith.constant 0 : index
    %16 = vector.load %arg9[%c0_16, %c0_17] : memref<8x1xf32, #tpu.memory_space<vmem>>, vector<8x1xf32>
    %cst_18 = arith.constant dense<0xFF800000> : vector<8xf32>
    %17 = vector.multi_reduction <maximumf>, %15, %cst_18 [1] : vector<8x8xf32> to vector<8xf32>
    %18 = vector.shape_cast %17 : vector<8xf32> to vector<8x1xf32>
    %19 = arith.maximumf %16, %18 : vector<8x1xf32>
    %20 = arith.subf %16, %19 : vector<8x1xf32>
    %21 = math.exp %20 : vector<8x1xf32>
    %22 = vector.broadcast %19 : vector<8x1xf32> to vector<8x8xf32>
    %23 = arith.subf %15, %22 : vector<8x8xf32>
    %24 = math.exp %23 : vector<8x8xf32>
    %c0_19 = arith.constant 0 : index
    %c0_20 = arith.constant 0 : index
    %25 = vector.load %arg10[%c0_19, %c0_20] : memref<8x1xf32, #tpu.memory_space<vmem>>, vector<8x1xf32>
    %26 = arith.mulf %21, %25 : vector<8x1xf32>
    %cst_21 = arith.constant dense<0.000000e+00> : vector<8xf32>
    %27 = vector.multi_reduction <add>, %24, %cst_21 [1] : vector<8x8xf32> to vector<8xf32>
    %28 = vector.shape_cast %27 : vector<8xf32> to vector<8x1xf32>
    %29 = arith.addf %26, %28 : vector<8x1xf32>
    %c0_22 = arith.constant 0 : index
    %c0_23 = arith.constant 0 : index
    %30 = vector.load %arg10[%c0_22, %c0_23] : memref<8x1xf32, #tpu.memory_space<vmem>>, vector<8x1xf32>
    tpu.vector_store %arg10[%c0_22, %c0_23], %29 {strides = array<i32>} : memref<8x1xf32, #tpu.memory_space<vmem>>, vector<8x1xf32>,
    %c0_24 = arith.constant 0 : index
    %c0_25 = arith.constant 0 : index
    %31 = vector.load %arg11[%c0_24, %c0_25] : memref<8x16xf32, #tpu.memory_space<vmem>>, vector<8x16xf32>
    %32 = vector.broadcast %21 : vector<8x1xf32> to vector<8x16xf32>
    %33 = arith.mulf %32, %31 : vector<8x16xf32>
    %cst_26 = arith.constant dense<0.000000e+00> : vector<8x16xf32>
    %34 = tpu.matmul %24, %8, %cst_26 {dimension_numbers = #tpu.dot_dimension_numbers<[1], [0], [0], [1], [0, 0, 1, 1], [], []>} : vector<8x8xf32>, vector<8x16xf32>, vector<8x16xf32> -> vector<8x16xf32>
    %35 = arith.addf %33, %34 : vector<8x16xf32>
    %c0_27 = arith.constant 0 : index
    %c0_28 = arith.constant 0 : index
    %36 = vector.load %arg11[%c0_27, %c0_28] : memref<8x16xf32, #tpu.memory_space<vmem>>, vector<8x16xf32>
    tpu.vector_store %arg11[%c0_27, %c0_28], %35 {strides = array<i32>} : memref<8x16xf32, #tpu.memory_space<vmem>>, vector<8x16xf32>,
    %c0_29 = arith.constant 0 : index
    %c0_30 = arith.constant 0 : index
    %37 = vector.load %arg9[%c0_29, %c0_30] : memref<8x1xf32, #tpu.memory_space<vmem>>, vector<8x1xf32>
    tpu.vector_store %arg9[%c0_29, %c0_30], %19 {strides = array<i32>} : memref<8x1xf32, #tpu.memory_space<vmem>>, vector<8x1xf32>,
    %c0_i32_31 = arith.constant 0 : i32
    %38 = arith.cmpi eq, %arg3, %c0_i32_31 : i32
    %39 = arith.extui %38 : i1 to i32
    %c0_i32_32 = arith.constant 0 : i32
    %40 = arith.cmpi ne, %39, %c0_i32_32 : i32
    scf.if %40 {
      %c0_33 = arith.constant 0 : index
      %c0_34 = arith.constant 0 : index
      %41 = vector.load %arg11[%c0_33, %c0_34] : memref<8x16xf32, #tpu.memory_space<vmem>>, vector<8x16xf32>
      %c0_35 = arith.constant 0 : index
      %c0_36 = arith.constant 0 : index
      %42 = vector.load %arg10[%c0_35, %c0_36] : memref<8x1xf32, #tpu.memory_space<vmem>>, vector<8x1xf32>
      %43 = vector.broadcast %42 : vector<8x1xf32> to vector<8x16xf32>
      %44 = arith.divf %41, %43 : vector<8x16xf32>
      %c0_37 = arith.constant 0 : index
      %c0_38 = arith.constant 0 : index
      %c0_39 = arith.constant 0 : index
      %c0_40 = arith.constant 0 : index
      %45 = vector.load %arg8[%c0_37, %c0_38, %c0_39, %c0_40] : memref<1x1x8x16xf32, #tpu.memory_space<vmem>>, vector<1x1x8x16xf32>
      %46 = vector.shape_cast %45 : vector<1x1x8x16xf32> to vector<8x16xf32>
      %47 = vector.shape_cast %44 : vector<8x16xf32> to vector<1x1x8x16xf32>
      tpu.vector_store %arg8[%c0_37, %c0_38, %c0_39, %c0_40], %47 {strides = array<i32>} : memref<1x1x8x16xf32, #tpu.memory_space<vmem>>, vector<1x1x8x16xf32>,
    } else {
    }
    return
  }
  func.func @transform_0(%arg0: i32, %arg1: i32, %arg2: i32, %arg3: i32) -> (i32, i32, i32, i32) {
    %c0_i32 = arith.constant 0 : i32
    %c0_i32_0 = arith.constant 0 : i32
    return %arg0, %arg1, %arg2, %c0_i32 : i32, i32, i32, i32
  }
  func.func @transform_1(%arg0: i32, %arg1: i32, %arg2: i32, %arg3: i32) -> (i32, i32, i32, i32) {
    %c0_i32 = arith.constant 0 : i32
    %c0_i32_0 = arith.constant 0 : i32
    return %arg0, %arg1, %arg3, %c0_i32 : i32, i32, i32, i32
  }
  func.func @transform_2(%arg0: i32, %arg1: i32, %arg2: i32, %arg3: i32) -> (i32, i32, i32, i32) {
    %c0_i32 = arith.constant 0 : i32
    %c0_i32_0 = arith.constant 0 : i32
    return %arg0, %arg1, %arg3, %c0_i32 : i32, i32, i32, i32
  }
  func.func @transform_3(%arg0: i32, %arg1: i32, %arg2: i32, %arg3: i32) -> (i32, i32, i32) {
    %c0_i32 = arith.constant 0 : i32
    %c0_i32_0 = arith.constant 0 : i32
    return %arg0, %c0_i32, %arg3 : i32, i32, i32
  }
  func.func @transform_4(%arg0: i32, %arg1: i32, %arg2: i32, %arg3: i32) -> (i32, i32, i32, i32) {
    %c0_i32 = arith.constant 0 : i32
    %c0_i32_0 = arith.constant 0 : i32
    return %arg0, %arg1, %arg2, %c0_i32 : i32, i32, i32, i32
  }
}

</mosaic_0001>

<llo_original>
// kernel: tpu_custom_call.1
$region0: #{tpu_custom_call.1}
  #allocation0 [shape = 'u32[]', space=smem, size = 0x4, offset = 0x4, fixed_abs, tag = 'smem constant byte address 0x4 - core index']
  #allocation1 [shape = 'u32[144,128]{1,0:T(1,128)}', space=vmem, size = 0x12000, scoped, tag = 'internal scratch']
  #allocation2 [shape = 'f32[8,1]{1,0:T(8,128)}', space=vmem, size = 0x1000, scoped, tag = 'scratch operand']
  #allocation3 [shape = 'f32[8,1]{1,0:T(8,128)}', space=vmem, size = 0x1000, scoped, tag = 'scratch operand']
  #allocation4 [shape = 'f32[8,16]{1,0:T(8,128)}', space=vmem, size = 0x1000, scoped, tag = 'scratch operand']
  %s0 = inlined_call_operand.hbm [shape: f32[2,2,8,16], index: 0, kind: input, shape index: {}]
  %s1 = inlined_call_operand.hbm [shape: f32[2,2,8,16], index: 1, kind: input, shape index: {}]
  %s2 = inlined_call_operand.hbm [shape: f32[2,2,8,16], index: 2, kind: input, shape index: {}]
  %s3 = inlined_call_operand.vmem [shape: f32[2,1,8], index: 3, kind: input, shape index: {}]
  %s4 = inlined_call_operand.hbm [shape: f32[2,2,8,16], index: 4, kind: output, shape index: {}]
  %s5 = sld [smem:[#allocation0]]
  $region69: #{tpu_custom_call.1} parent=0
    _
  %s7 = ssub.s32 1, %s5
  %s8 = scalar_select 0, %s7, %s5
  $region1: #{tpu_custom_call.1} parent=0
    #allocation5 [shape = 'u8[8192]{0}', space=vmem, size = 0x2000, scoped, tag = 'input window, operand 0']
    #allocation6 [shape = 's32[2]{0}', space=sflag, size = 0x8, scoped, tag = 'scoped memory for tpu_custom_call.1']
    #allocation7 [shape = 's32[2]{0}', space=sflag, size = 0x8, scoped, tag = 'scoped memory for tpu_custom_call.1']
    #allocation8 [shape = 'u8[8192]{0}', space=vmem, size = 0x2000, scoped, tag = 'input window, operand 1']
    #allocation9 [shape = 's32[2]{0}', space=sflag, size = 0x8, scoped, tag = 'scoped memory for tpu_custom_call.1']
    #allocation10 [shape = 'u8[8192]{0}', space=vmem, size = 0x2000, scoped, tag = 'input window, operand 2']
    #allocation11 [shape = 'u8[8192]{0}', space=vmem, size = 0x2000, scoped, tag = 'output window, operand 0']
    %9 = vsyncpa [#allocation6], 0
    %s10 = scalar_lea.sflag [#allocation6], 1
    %11 = vsyncpa %s10, 0
    %12 = vsyncpa [#allocation9], 0
    %s13 = scalar_lea.sflag [#allocation9], 1
    %14 = vsyncpa %s13, 0
    %15 = vsyncpa [#allocation7], 0
    %s16 = scalar_lea.sflag [#allocation7], 1
    %17 = vsyncpa %s16, 0
    loop: start=0, step=1, limit=6
    $region2: #{tpu_custom_call.1} parent=1 // loop_pre_header
      _
    $region3: #{tpu_custom_call.1} parent=1 // loop_header
      %s19 = sphi 0, %s23
      %p20 = scmp.ge.s32.totalorder %s19, 6
      %s26 = sphi 0, %s52
      %s27 = sphi 0, %s48
      %s28 = sphi 0, %s44
      %s29 = sphi 0, %s40
      %s30 = sphi 0, %s26
      %s31 = sphi 0, %s27
      %s32 = sphi 0, %s28
      %s33 = sphi 0, %s29
      %s34 = sphi 0, %s30
      %s35 = sphi 0, %s31
      %s36 = sphi 0, %s32
      %s37 = sphi 0, %s33
      %s59 = sphi 0, %s61
      %s62 = sphi 0, %s59
      %s63 = sphi 0, %s62
      %s79 = sphi 0, %s63
      %s89 = sphi 0, %s91
      %s92 = sphi 0, %s89
      %s93 = sphi 0, %s92
      %s109 = sphi 0, %s93
      %s119 = sphi 0, %s121
      %s122 = sphi 0, %s119
      %s123 = sphi 0, %s122
      %s139 = sphi 0, %s123
      %s147 = sphi 0, %s149
      %s150 = sphi 0, %s147
      %s151 = sphi 0, %s150
      %s167 = sphi 0, %s151
      %s177 = sphi 0, %s179
      %s180 = sphi 0, %s177
      %s181 = sphi 0, %s180
      %s197 = sphi 0, %s181
    $region4: #{tpu_custom_call.1} parent=1 // loop_header_branch
      %22 = sbr.rel (%p20) target = $region8
    $region5: #{tpu_custom_call.1} parent=1 // loop_body
      %s24 = ssub.s32 %s19, 1
      %s25 = ssub.s32 %s19, 2
      %s38 = sadd.s32 1, %s29
      %p39 = scmp.ge.s32.totalorder %s38, 1
      %s40 = scalar_select %p39, 0, %s38
      %s41 = sadd.s32 1, %s28
      %s42 = scalar_select %p39, %s41, %s28
      %p43 = scmp.ge.s32.totalorder %s42, 1
      %s44 = scalar_select %p43, 0, %s42
      %s45 = sadd.s32 1, %s27
      %s46 = scalar_select %p43, %s45, %s27
      %p47 = scmp.ge.s32.totalorder %s46, 2
      %s48 = scalar_select %p47, 0, %s46
      %s49 = sadd.s32 1, %s26
      %s50 = scalar_select %p47, %s49, %s26
      %p51 = scmp.ge.s32.totalorder %s50, 2
      %s52 = scalar_select %p51, 0, %s50
      %s53 = ssub.s32 %s26, %s52
      %s54 = ssub.s32 %s27, %s48
      %s55 = sor.u32 %s53, %s54
      %s56 = ssub.s32 %s28, %s44
      %s57 = sor.u32 %s55, %s56
      %p58 = scmp.eq.s32.totalorder %s57, 0
      %s60 = sadd.s32 %s59, 1
      %s61 = scalar_select %p58, %s59, %s60
      %p64 = pneg %p58
      %p65 = scmp.eq.s32.totalorder %s19, 3
      %p66 = por %p64, %p65
      %p67 = scmp.ne.s32.totalorder %s59, %s62
      %p68 = scmp.eq.s32.totalorder %s19, 0
      %p69 = por %p67, %p68
      %p70 = scmp.ne.s32.totalorder %s59, %s62
      %p71 = scmp.eq.s32.totalorder %s24, 3
      %p72 = por %p70, %p71
      %p73 = scmp.ne.s32.totalorder %s62, %s63
      %p74 = scmp.eq.s32.totalorder %s24, 0
      %p75 = por %p73, %p74
      %p76 = scmp.ne.s32.totalorder %s62, %s63
      %p77 = scmp.eq.s32.totalorder %s25, 3
      %p78 = por %p76, %p77
      %p80 = scmp.ne.s32.totalorder %s63, %s79
      %p81 = scmp.eq.s32.totalorder %s25, 0
      %p82 = por %p80, %p81
      %s83 = ssub.s32 %s26, %s52
      %s84 = ssub.s32 %s27, %s48
      %s85 = sor.u32 %s83, %s84
      %s86 = ssub.s32 %s29, %s40
      %s87 = sor.u32 %s85, %s86
      %p88 = scmp.eq.s32.totalorder %s87, 0
      %s90 = sadd.s32 %s89, 1
      %s91 = scalar_select %p88, %s89, %s90
      %p94 = pneg %p88
      %p95 = scmp.eq.s32.totalorder %s19, 3
      %p96 = por %p94, %p95
      %p97 = scmp.ne.s32.totalorder %s89, %s92
      %p98 = scmp.eq.s32.totalorder %s19, 0
      %p99 = por %p97, %p98
      %p100 = scmp.ne.s32.totalorder %s89, %s92
      %p101 = scmp.eq.s32.totalorder %s24, 3
      %p102 = por %p100, %p101
      %p103 = scmp.ne.s32.totalorder %s92, %s93
      %p104 = scmp.eq.s32.totalorder %s24, 0
      %p105 = por %p103, %p104
      %p106 = scmp.ne.s32.totalorder %s92, %s93
      %p107 = scmp.eq.s32.totalorder %s25, 3
      %p108 = por %p106, %p107
      %p110 = scmp.ne.s32.totalorder %s93, %s109
      %p111 = scmp.eq.s32.totalorder %s25, 0
      %p112 = por %p110, %p111
      %s113 = ssub.s32 %s26, %s52
      %s114 = ssub.s32 %s27, %s48
      %s115 = sor.u32 %s113, %s114
      %s116 = ssub.s32 %s29, %s40
      %s117 = sor.u32 %s115, %s116
      %p118 = scmp.eq.s32.totalorder %s117, 0
      %s120 = sadd.s32 %s119, 1
      %s121 = scalar_select %p118, %s119, %s120
      %p124 = pneg %p118
      %p125 = scmp.eq.s32.totalorder %s19, 3
      %p126 = por %p124, %p125
      %p127 = scmp.ne.s32.totalorder %s119, %s122
      %p128 = scmp.eq.s32.totalorder %s19, 0
      %p129 = por %p127, %p128
      %p130 = scmp.ne.s32.totalorder %s119, %s122
      %p131 = scmp.eq.s32.totalorder %s24, 3
      %p132 = por %p130, %p131
      %p133 = scmp.ne.s32.totalorder %s122, %s123
      %p134 = scmp.eq.s32.totalorder %s24, 0
      %p135 = por %p133, %p134
      %p136 = scmp.ne.s32.totalorder %s122, %s123
      %p137 = scmp.eq.s32.totalorder %s25, 3
      %p138 = por %p136, %p137
      %p140 = scmp.ne.s32.totalorder %s123, %s139
      %p141 = scmp.eq.s32.totalorder %s25, 0
      %p142 = por %p140, %p141
      %s143 = ssub.s32 %s26, %s52
      %s144 = ssub.s32 %s29, %s40
      %s145 = sor.u32 %s143, %s144
      %p146 = scmp.eq.s32.totalorder %s145, 0
      %s148 = sadd.s32 %s147, 1
      %s149 = scalar_select %p146, %s147, %s148
      %p152 = pneg %p146
      %p153 = scmp.eq.s32.totalorder %s19, 3
      %p154 = por %p152, %p153
      %p155 = scmp.ne.s32.totalorder %s147, %s150
      %p156 = scmp.eq.s32.totalorder %s19, 0
      %p157 = por %p155, %p156
      %p158 = scmp.ne.s32.totalorder %s147, %s150
      %p159 = scmp.eq.s32.totalorder %s24, 3
      %p160 = por %p158, %p159
      %p161 = scmp.ne.s32.totalorder %s150, %s151
      %p162 = scmp.eq.s32.totalorder %s24, 0
      %p163 = por %p161, %p162
      %p164 = scmp.ne.s32.totalorder %s150, %s151
      %p165 = scmp.eq.s32.totalorder %s25, 3
      %p166 = por %p164, %p165
      %p168 = scmp.ne.s32.totalorder %s151, %s167
      %p169 = scmp.eq.s32.totalorder %s25, 0
      %p170 = por %p168, %p169
      %s171 = ssub.s32 %s26, %s52
      %s172 = ssub.s32 %s27, %s48
      %s173 = sor.u32 %s171, %s172
      %s174 = ssub.s32 %s28, %s44
      %s175 = sor.u32 %s173, %s174
      %p176 = scmp.eq.s32.totalorder %s175, 0
      %s178 = sadd.s32 %s177, 1
      %s179 = scalar_select %p176, %s177, %s178
      %p182 = pneg %p176
      %p183 = scmp.eq.s32.totalorder %s19, 3
      %p184 = por %p182, %p183
      %p185 = scmp.ne.s32.totalorder %s177, %s180
      %p186 = scmp.eq.s32.totalorder %s19, 0
      %p187 = por %p185, %p186
      %p188 = scmp.ne.s32.totalorder %s177, %s180
      %p189 = scmp.eq.s32.totalorder %s24, 3
      %p190 = por %p188, %p189
      %p191 = scmp.ne.s32.totalorder %s180, %s181
      %p192 = scmp.eq.s32.totalorder %s24, 0
      %p193 = por %p191, %p192
      %p194 = scmp.ne.s32.totalorder %s180, %s181
      %p195 = scmp.eq.s32.totalorder %s25, 3
      %p196 = por %p194, %p195
      %p198 = scmp.ne.s32.totalorder %s181, %s197
      %p199 = scmp.eq.s32.totalorder %s25, 0
      %p200 = por %p198, %p199
      %p201 = scmp.le.s32.totalorder 1, %s19
      %p202 = scmp.lt.s32.totalorder %s19, 5
      %p203 = pnand %p201, %p202
      %p204 = pneg %p203
      // Predicated region
      $region9: #{tpu_custom_call.1} parent=5 // pred_check
        _
      $region10: #{tpu_custom_call.1} parent=5 // pred_check_branch
        %206 = sbr.rel (%p203) target = $region12
      $region11: #{tpu_custom_call.1} parent=5 // pred_region
        %s207 = ssub.s32 %s19, 1
      $region12: #{tpu_custom_call.1} parent=5 // pred_fallthru
        _
      %p208 = scmp.lt.s32.totalorder %s19, 4
      // Predicated region
      $region13: #{tpu_custom_call.1} parent=5 // pred_check
        %p209 = pneg %p208
      $region14: #{tpu_custom_call.1} parent=5 // pred_check_branch
        %211 = sbr.rel (%p209) target = $region16
      $region15: #{tpu_custom_call.1} parent=5 // pred_region
        // Predicated region
        $region17: #{tpu_custom_call.1} parent=15 // pred_check
          %p212 = pneg %p69
        $region18: #{tpu_custom_call.1} parent=15 // pred_check_branch
          %214 = sbr.rel (%p212) target = $region20
        $region19: #{tpu_custom_call.1} parent=15 // pred_region
          %s215 = sand.u32 %s59, 1
          %s216 = scalar_lea.sflag [#allocation6], %s215
          %s217 = sand.u32 %s59, 1
          %s218 = smul.addr %s217, 8
          %s219 = scalar_lea.vmem [#allocation5], %s218
          %s221 = ssub.s32 128, 128
          %222 = vsyncadd %s216, %s221
          %s223 = sadd.s32 %s28, %s27
          %s224 = smul.addr %s26, 2
          %s225 = sadd.s32 %s223, %s224
          %s226 = smul.addr %s225, 128
          %s227 = scalar_lea.hbm %s0, %s226
          %s229 = sshll.u32 %s219, 4
          %s230 = int_to_ptr.vmem [resolvable:$true] %s229
          %232 = dma.hbm_to_vmem [thread:$0]  %s227, 128, %s230, %s216
        $region20: #{tpu_custom_call.1} parent=15 // pred_fallthru
          _
        // Predicated region
        $region21: #{tpu_custom_call.1} parent=15 // pred_check
          %p233 = pneg %p99
        $region22: #{tpu_custom_call.1} parent=15 // pred_check_branch
          %235 = sbr.rel (%p233) target = $region24
        $region23: #{tpu_custom_call.1} parent=15 // pred_region
          %s236 = sand.u32 %s19, 1
          %s237 = scalar_lea.sflag [#allocation9], %s236
          %s238 = sand.u32 %s89, 1
          %s239 = smul.addr %s238, 8
          %s240 = scalar_lea.vmem [#allocation8], %s239
          %s242 = ssub.s32 128, 128
          %243 = vsyncadd %s237, %s242
          %s244 = sadd.s32 %s29, %s27
          %s245 = smul.addr %s26, 2
          %s246 = sadd.s32 %s244, %s245
          %s247 = smul.addr %s246, 128
          %s248 = scalar_lea.hbm %s1, %s247
          %s250 = sshll.u32 %s240, 4
          %s251 = int_to_ptr.vmem [resolvable:$true] %s250
          %253 = dma.hbm_to_vmem [thread:$0]  %s248, 128, %s251, %s237
        $region24: #{tpu_custom_call.1} parent=15 // pred_fallthru
          _
        // Predicated region
        $region25: #{tpu_custom_call.1} parent=15 // pred_check
          %p254 = pneg %p129
        $region26: #{tpu_custom_call.1} parent=15 // pred_check_branch
          %256 = sbr.rel (%p254) target = $region28
        $region27: #{tpu_custom_call.1} parent=15 // pred_region
          %s257 = sand.u32 %s19, 1
          %s258 = scalar_lea.sflag [#allocation9], %s257
          %s259 = sand.u32 %s119, 1
          %s260 = smul.addr %s259, 8
          %s261 = scalar_lea.vmem [#allocation10], %s260
          %s263 = ssub.s32 128, 128
          %264 = vsyncadd %s258, %s263
          %s265 = sadd.s32 %s29, %s27
          %s266 = smul.addr %s26, 2
          %s267 = sadd.s32 %s265, %s266
          %s268 = smul.addr %s267, 128
          %s269 = scalar_lea.hbm %s2, %s268
          %s271 = sshll.u32 %s261, 4
          %s272 = int_to_ptr.vmem [resolvable:$true] %s271
          %274 = dma.hbm_to_vmem [thread:$0]  %s269, 128, %s272, %s258
        $region28: #{tpu_custom_call.1} parent=15 // pred_fallthru
          _
        // Predicated region
        $region29: #{tpu_custom_call.1} parent=15 // pred_check
          %p275 = pneg %p157
        $region30: #{tpu_custom_call.1} parent=15 // pred_check_branch
          %277 = sbr.rel (%p275) target = $region32
        $region31: #{tpu_custom_call.1} parent=15 // pred_region
          %p278 = scmp.lt.s32.totalorder %s26, 1
          %s279 = scalar_select %p278, %s26, 1
          %p280 = scmp.lt.s32.totalorder %s29, 0
          %s281 = scalar_select %p280, %s29, 0
          %s282 = sadd.s32 %s281, %s279
          %s283 = scalar_lea.vmem %s3, %s282
        $region32: #{tpu_custom_call.1} parent=15 // pred_fallthru
          _
      $region16: #{tpu_custom_call.1} parent=5 // pred_fallthru
        _
      %p284 = scmp.le.s32.totalorder 1, %s19
      %p285 = scmp.lt.s32.totalorder %s19, 5
      %p286 = pnand %p284, %p285
      %p287 = pneg %p286
      // Predicated region
      $region33: #{tpu_custom_call.1} parent=5 // pred_check
        _
      $region34: #{tpu_custom_call.1} parent=5 // pred_check_branch
        %289 = sbr.rel (%p286) target = $region36
      $region35: #{tpu_custom_call.1} parent=5 // pred_region
        %s290 = ssub.s32 %s19, 1
        %s291 = sand.u32 %s62, 1
        %s292 = scalar_lea.sflag [#allocation6], %s291
        %s293 = sand.u32 %s62, 1
        %s294 = smul.addr %s293, 8
        %s295 = scalar_lea.vmem [#allocation5], %s294
        // Predicated region
        $region37: #{tpu_custom_call.1} parent=35 // pred_check
          %p296 = pneg %p75
        $region38: #{tpu_custom_call.1} parent=35 // pred_check_branch
          %298 = sbr.rel (%p296) target = $region40
        $region39: #{tpu_custom_call.1} parent=35 // pred_region
          %299 = dma.done %s292, 128
        $region40: #{tpu_custom_call.1} parent=35 // pred_fallthru
          _
        %s300 = sand.u32 %s24, 1
        %s301 = scalar_lea.sflag [#allocation9], %s300
        %s302 = sand.u32 %s92, 1
        %s303 = smul.addr %s302, 8
        %s304 = scalar_lea.vmem [#allocation8], %s303
        // Predicated region
        $region41: #{tpu_custom_call.1} parent=35 // pred_check
          %p305 = pneg %p105
        $region42: #{tpu_custom_call.1} parent=35 // pred_check_branch
          %307 = sbr.rel (%p305) target = $region44
        $region43: #{tpu_custom_call.1} parent=35 // pred_region
          %308 = dma.done %s301, 128
        $region44: #{tpu_custom_call.1} parent=35 // pred_fallthru
          _
        %s309 = sand.u32 %s24, 1
        %s310 = scalar_lea.sflag [#allocation9], %s309
        %s311 = sand.u32 %s122, 1
        %s312 = smul.addr %s311, 8
        %s313 = scalar_lea.vmem [#allocation10], %s312
        // Predicated region
        $region45: #{tpu_custom_call.1} parent=35 // pred_check
          %p314 = pneg %p135
        $region46: #{tpu_custom_call.1} parent=35 // pred_check_branch
          %316 = sbr.rel (%p314) target = $region48
        $region47: #{tpu_custom_call.1} parent=35 // pred_region
          %317 = dma.done %s310, 128
        $region48: #{tpu_custom_call.1} parent=35 // pred_fallthru
          _
        %s318 = sand.u32 %s62, 1
        %s319 = scalar_lea.sflag [#allocation6], %s318
        %s320 = sand.u32 %s62, 1
        %s321 = smul.addr %s320, 8
        %s322 = scalar_lea.vmem [#allocation5], %s321
        %p323 = pneg %p75
        %p324 = pneg %p72
        %s325 = sand.u32 %s24, 1
        %s326 = scalar_lea.sflag [#allocation9], %s325
        %s327 = sand.u32 %s92, 1
        %s328 = smul.addr %s327, 8
        %s329 = scalar_lea.vmem [#allocation8], %s328
        %p330 = pneg %p105
        %p331 = pneg %p102
        %s332 = sand.u32 %s24, 1
        %s333 = scalar_lea.sflag [#allocation9], %s332
        %s334 = sand.u32 %s122, 1
        %s335 = smul.addr %s334, 8
        %s336 = scalar_lea.vmem [#allocation10], %s335
        %p337 = pneg %p135
        %p338 = pneg %p132
        %p339 = scmp.lt.s32.totalorder %s30, 1
        %s340 = scalar_select %p339, %s30, 1
        %p341 = scmp.lt.s32.totalorder %s33, 0
        %s342 = scalar_select %p341, %s33, 0
        %s343 = sadd.s32 %s342, %s340
        %s344 = scalar_lea.vmem %s3, %s343
        %p345 = pneg %p163
        %p346 = pneg %p160
        %p347 = pneg %p193
        %p348 = pneg %p190
        %s349 = sand.u32 %s180, 1
        %s350 = scalar_lea.sflag [#allocation7], %s349
        %s351 = sand.u32 %s180, 1
        %s352 = smul.addr %s351, 8
        %s353 = scalar_lea.vmem [#allocation11], %s352
        %p354 = scmp.lt.s32.totalorder %s30, 1
        %s355 = scalar_select %p354, %s30, 1
        %p356 = scmp.lt.s32.totalorder %s33, 0
        %s357 = scalar_select %p356, %s33, 0
        %s358 = sadd.s32 %s357, %s355
        %s359 = scalar_lea.vmem %s3, %s358
        %p360 = scmp.eq.s32.totalorder %s33, 0
        // Predicated region
        $region49: #{tpu_custom_call.1} parent=35 // pred_check
          %p361 = pneg %p360
        $region50: #{tpu_custom_call.1} parent=35 // pred_check_branch
          %363 = sbr.rel (%p361) target = $region52
        $region51: #{tpu_custom_call.1} parent=35 // pred_region
          %vm364 = vcmask 7168
          %365 = vst.msk [vmem:[#allocation2] sm:$0xff] %vm364, -inf
          %366 = vst.msk [vmem:[#allocation3] sm:$0xff] %vm364, 0.0
          %vm367 = vcmask 130048
          %368 = vst.msk [vmem:[#allocation4] sm:$0xff] %vm367, 0.0
        $region52: #{tpu_custom_call.1} parent=35 // pred_fallthru
          _
        %v369 = vld [vmem:[%s295] sm:$0xff]
        %v370 = vld [vmem:[%s304] sm:$0xff]
        %v371 = vld [vmem:[%s313] sm:$0xff]
        %v372 = vld [vmem:[%s359] sm:$0x1]
        %vm373 = vcmask 130048
        %v375 = vsel %vm373, %v369, 0
        %v378 = vsel %vm373, %v370, 0
        %380 = vmatprep.subr.mxu0 0.0
        %381 = vmatpush1.xpose.msra.mxu0 0.0
        %382 = vmatprep.subr.mxu0 0.0
        %383 = vmatpush1.xpose.msra.mxu0 0.0
        %384 = vmatprep.subr.mxu0 0.0
        %385 = vmatpush1.xpose.msra.mxu0 0.0
        %386 = vmatprep.subr.mxu0 0.0
        %387 = vmatpush1.xpose.msra.mxu0 0.0
        %388 = vmatprep.subr.mxu0 0.0
        %389 = vmatpush1.xpose.msra.mxu0 0.0
        %390 = vmatprep.subr.mxu0 0.0
        %391 = vmatpush1.xpose.msra.mxu0 0.0
        %392 = vmatprep.subr.mxu0 0.0
        %393 = vmatpush1.xpose.msra.mxu0 0.0
        %394 = vmatprep.subr.mxu0 0.0
        %395 = vmatpush1.xpose.msra.mxu0 0.0
        %396 = vmatprep.subr.mxu0 0.0
        %397 = vmatpush1.xpose.msra.mxu0 0.0
        %398 = vmatprep.subr.mxu0 0.0
        %399 = vmatpush1.xpose.msra.mxu0 0.0
        %400 = vmatprep.subr.mxu0 0.0
        %401 = vmatpush1.xpose.msra.mxu0 0.0
        %402 = vmatprep.subr.mxu0 0.0
        %403 = vmatpush1.xpose.msra.mxu0 0.0
        %404 = vmatprep.subr.mxu0 0.0
        %405 = vmatpush1.xpose.msra.mxu0 0.0
        %406 = vmatprep.subr.mxu0 0.0
        %407 = vmatpush1.xpose.msra.mxu0 0.0
        %408 = vmatprep.subr.mxu0 0.0
        %409 = vmatpush1.xpose.msra.mxu0 0.0
        %410 = vmatprep.subr.mxu0 0.0
        %411 = vmatpush1.xpose.msra.mxu0 %v378
        %412 = vmatprep.subr.mxu0 0.0
        %413 = vmatpush2.xpose.msra.mxu0 0.0
        %414 = vmatprep.subr.mxu0 0.0
        %415 = vmatpush2.xpose.msra.mxu0 0.0
        %416 = vmatprep.subr.mxu0 0.0
        %417 = vmatpush2.xpose.msra.mxu0 0.0
        %418 = vmatprep.subr.mxu0 0.0
        %419 = vmatpush2.xpose.msra.mxu0 0.0
        %420 = vmatprep.subr.mxu0 0.0
        %421 = vmatpush2.xpose.msra.mxu0 0.0
        %422 = vmatprep.subr.mxu0 0.0
        %423 = vmatpush2.xpose.msra.mxu0 0.0
        %424 = vmatprep.subr.mxu0 0.0
        %425 = vmatpush2.xpose.msra.mxu0 0.0
        %426 = vmatprep.subr.mxu0 0.0
        %427 = vmatpush2.xpose.msra.mxu0 0.0
        %428 = vmatprep.subr.mxu0 0.0
        %429 = vmatpush2.xpose.msra.mxu0 0.0
        %430 = vmatprep.subr.mxu0 0.0
        %431 = vmatpush2.xpose.msra.mxu0 0.0
        %432 = vmatprep.subr.mxu0 0.0
        %433 = vmatpush2.xpose.msra.mxu0 0.0
        %434 = vmatprep.subr.mxu0 0.0
        %435 = vmatpush2.xpose.msra.mxu0 0.0
        %436 = vmatprep.subr.mxu0 0.0
        %437 = vmatpush2.xpose.msra.mxu0 0.0
        %438 = vmatprep.subr.mxu0 0.0
        %439 = vmatpush2.xpose.msra.mxu0 0.0
        %440 = vmatprep.subr.mxu0 0.0
        %441 = vmatpush2.xpose.msra.mxu0 0.0
        %442 = vmatprep.subr.mxu0 0.0
        %443 = vmatpush2.xpose.msra.mxu0 0.0
        %444 = vmatprep.mubr.f32.mxu0 0.0
        %445 = vmatmul.mubr.f32.gmra.mxu0 %v375
        %v446 = vpop.f32.mrf.mxu0
        %v447 = vadd.f32 0.0, %v446
        %v448 = vpop.f32.mrf.mxu0
        %449 = vdwg.mxu0
        %v450 = vmul.f32 %v447, 0.25
        %v452 = vlaneseq
        %v453 = vshrl.u32 %v452, 7
        %v454 = vsub.s32 0, %v453
        %v455 = vrot.slane %v372, %v454
        %v457 = vadd.f32 %v450, %v455
        %v458 = vld [vmem:[#allocation2] sm:$0xff]
        %vm459 = vcmask 64512
        %v460 = vsel %vm459, %v457, -inf
        %461 = vmax.xlane.f32.xlu0 %v460
        %v462 = vpop.xlane.xlu0 %461
        %v463 = vmax.f32 %v458, %v462
        %v464 = vsub.f32 %v458, %v463
        %v465 = vmul.f32 %v464, 1.442695
        %v466 = vpow.pop %v465
        %468 = vset.pattern.permute.xlu0 0
        %469 = vperm.xlu0 %468, %v463
        %v470 = vpop.permute.xlu0 %469
        %v472 = vsub.f32 %v457, %v470
        %v473 = vmul.f32 %v472, 1.442695
        %v474 = vpow.pop %v473
        %v475 = vld [vmem:[#allocation3] sm:$0xff]
        %v476 = vmul.f32 %v466, %v475
        %v477 = vsel %vm459, %v474, 0.0
        %478 = vadd.xlane.f32.xlu0 %v477
        %v479 = vpop.xlane.xlu0 %478
        %v480 = vadd.f32 %v476, %v479
        %vm481 = vcmask 7168
        %482 = vst.msk [vmem:[#allocation3] sm:$0xff] %vm481, %v480
        %v483 = vld [vmem:[#allocation4] sm:$0xff]
        %485 = vset.pattern.permute.xlu0 0
        %486 = vperm.xlu0 %485, %v466
        %v487 = vpop.permute.xlu0 %486
        %v489 = vmul.f32 %v487, %v483
        %v491 = vsel %vm459, %v474, 0
        %493 = vmatprep.subr.mxu0 0.0
        %494 = vmatpush1.msra.mxu0 0.0
        %495 = vmatprep.subr.mxu0 0.0
        %496 = vmatpush1.msra.mxu0 0.0
        %497 = vmatprep.subr.mxu0 0.0
        %498 = vmatpush1.msra.mxu0 0.0
        %499 = vmatprep.subr.mxu0 0.0
        %500 = vmatpush1.msra.mxu0 0.0
        %501 = vmatprep.subr.mxu0 0.0
        %502 = vmatpush1.msra.mxu0 0.0
        %503 = vmatprep.subr.mxu0 0.0
        %504 = vmatpush1.msra.mxu0 0.0
        %505 = vmatprep.subr.mxu0 0.0
        %506 = vmatpush1.msra.mxu0 0.0
        %507 = vmatprep.subr.mxu0 0.0
        %508 = vmatpush1.msra.mxu0 0.0
        %509 = vmatprep.subr.mxu0 0.0
        %510 = vmatpush1.msra.mxu0 0.0
        %511 = vmatprep.subr.mxu0 0.0
        %512 = vmatpush1.msra.mxu0 0.0
        %513 = vmatprep.subr.mxu0 0.0
        %514 = vmatpush1.msra.mxu0 0.0
        %515 = vmatprep.subr.mxu0 0.0
        %516 = vmatpush1.msra.mxu0 0.0
        %517 = vmatprep.subr.mxu0 0.0
        %518 = vmatpush1.msra.mxu0 0.0
        %519 = vmatprep.subr.mxu0 0.0
        %520 = vmatpush1.msra.mxu0 0.0
        %521 = vmatprep.subr.mxu0 0.0
        %522 = vmatpush1.msra.mxu0 0.0
        %523 = vmatprep.subr.mxu0 0.0
        %524 = vmatpush1.msra.mxu0 %v371
        %525 = vmatprep.subr.mxu0 0.0
        %526 = vmatpush2.msra.mxu0 0.0
        %527 = vmatprep.subr.mxu0 0.0
        %528 = vmatpush2.msra.mxu0 0.0
        %529 = vmatprep.subr.mxu0 0.0
        %530 = vmatpush2.msra.mxu0 0.0
        %531 = vmatprep.subr.mxu0 0.0
        %532 = vmatpush2.msra.mxu0 0.0
        %533 = vmatprep.subr.mxu0 0.0
        %534 = vmatpush2.msra.mxu0 0.0
        %535 = vmatprep.subr.mxu0 0.0
        %536 = vmatpush2.msra.mxu0 0.0
        %537 = vmatprep.subr.mxu0 0.0
        %538 = vmatpush2.msra.mxu0 0.0
        %539 = vmatprep.subr.mxu0 0.0
        %540 = vmatpush2.msra.mxu0 0.0
        %541 = vmatprep.subr.mxu0 0.0
        %542 = vmatpush2.msra.mxu0 0.0
        %543 = vmatprep.subr.mxu0 0.0
        %544 = vmatpush2.msra.mxu0 0.0
        %545 = vmatprep.subr.mxu0 0.0
        %546 = vmatpush2.msra.mxu0 0.0
        %547 = vmatprep.subr.mxu0 0.0
        %548 = vmatpush2.msra.mxu0 0.0
        %549 = vmatprep.subr.mxu0 0.0
        %550 = vmatpush2.msra.mxu0 0.0
        %551 = vmatprep.subr.mxu0 0.0
        %552 = vmatpush2.msra.mxu0 0.0
        %553 = vmatprep.subr.mxu0 0.0
        %554 = vmatpush2.msra.mxu0 0.0
        %555 = vmatprep.subr.mxu0 0.0
        %556 = vmatpush2.msra.mxu0 0.0
        %557 = vmatprep.mubr.f32.mxu0 0.0
        %558 = vmatmul.mubr.f32.gmra.mxu0 %v491
        %v559 = vpop.f32.mrf.mxu0
        %v560 = vadd.f32 0.0, %v559
        %v561 = vpop.f32.mrf.mxu0
        %562 = vdwg.mxu0
        %v563 = vadd.f32 %v489, %v560
        %564 = vst.msk [vmem:[#allocation4] sm:$0xff] %vm373, %v563
        %565 = vst.msk [vmem:[#allocation2] sm:$0xff] %vm481, %v463
        // Predicated region
        $region53: #{tpu_custom_call.1} parent=35 // pred_check
          %p566 = pneg %p360
        $region54: #{tpu_custom_call.1} parent=35 // pred_check_branch
          %568 = sbr.rel (%p566) target = $region56
        $region55: #{tpu_custom_call.1} parent=35 // pred_region
          %v569 = vld [vmem:[#allocation4] sm:$0xff]
          %v570 = vld [vmem:[#allocation3] sm:$0xff]
          %572 = vset.pattern.permute.xlu0 0
          %573 = vperm.xlu0 %572, %v570
          %v574 = vpop.permute.xlu0 %573
          %v576 = vrcp.pop %v574
          %v577 = vmul.f32 %v569, %v576
          %578 = vst.msk [vmem:[%s353] sm:$0xff] %vm373, %v577
        $region56: #{tpu_custom_call.1} parent=35 // pred_fallthru
          _
        %s579 = sand.u32 %s180, 1
        %s580 = scalar_lea.sflag [#allocation7], %s579
        %s581 = sand.u32 %s180, 1
        %s582 = smul.addr %s581, 8
        %s583 = scalar_lea.vmem [#allocation11], %s582
        // Predicated region
        $region57: #{tpu_custom_call.1} parent=35 // pred_check
          %p584 = pneg %p190
        $region58: #{tpu_custom_call.1} parent=35 // pred_check_branch
          %586 = sbr.rel (%p584) target = $region60
        $region59: #{tpu_custom_call.1} parent=35 // pred_region
          %s588 = ssub.s32 128, 128
          %589 = vsyncadd %s580, %s588
          %s590 = sadd.s32 %s32, %s31
          %s591 = smul.addr %s30, 2
          %s592 = sadd.s32 %s590, %s591
          %s593 = smul.addr %s592, 128
          %s594 = scalar_lea.hbm %s4, %s593
          %s596 = sshll.u32 %s583, 4
          %s597 = int_to_ptr.vmem [resolvable:$true] %s596
          %599 = dma.vmem_to_hbm [thread:$0]  %s597, 128, %s594, %s580
        $region60: #{tpu_custom_call.1} parent=35 // pred_fallthru
          _
      $region36: #{tpu_custom_call.1} parent=5 // pred_fallthru
        _
      %p600 = scmp.le.s32.totalorder 2, %s19
      // Predicated region
      $region61: #{tpu_custom_call.1} parent=5 // pred_check
        %p601 = pneg %p600
      $region62: #{tpu_custom_call.1} parent=5 // pred_check_branch
        %603 = sbr.rel (%p601) target = $region64
      $region63: #{tpu_custom_call.1} parent=5 // pred_region
        %s604 = ssub.s32 %s19, 2
        // Predicated region
        $region65: #{tpu_custom_call.1} parent=63 // pred_check
          %p605 = pneg %p196
        $region66: #{tpu_custom_call.1} parent=63 // pred_check_branch
          %607 = sbr.rel (%p605) target = $region68
        $region67: #{tpu_custom_call.1} parent=63 // pred_region
          %s608 = sand.u32 %s181, 1
          %s609 = scalar_lea.sflag [#allocation7], %s608
          %s610 = sand.u32 %s181, 1
          %s611 = smul.addr %s610, 8
          %s612 = scalar_lea.vmem [#allocation11], %s611
          %613 = dma.done %s609, 128
        $region68: #{tpu_custom_call.1} parent=63 // pred_fallthru
          _
      $region64: #{tpu_custom_call.1} parent=5 // pred_fallthru
        _
    $region6: #{tpu_custom_call.1} parent=1 // loop_footer
      %s23 = sadd.s32 1, %s19
    $region7: #{tpu_custom_call.1} parent=1 // loop_footer_branch
      %18 = sbr.rel target = $region3
    $region8: #{tpu_custom_call.1} parent=1 // loop_exit
      _
    %614 = vsyncpa [#allocation6], 1
    %s615 = scalar_lea.sflag [#allocation6], 1
    %616 = vsyncpa %s615, 1
    %617 = vsyncpa [#allocation9], 1
    %s618 = scalar_lea.sflag [#allocation9], 1
    %619 = vsyncpa %s618, 1
    %620 = vsyncpa [#allocation7], 1
    %s621 = scalar_lea.sflag [#allocation7], 1
    %622 = vsyncpa %s621, 1

</llo_original>
